<compile_context>
chip_gen: v7x
topology: tpu7x:2x2x1
jax: 0.10.0
libtpu: 0.0.40
codegen_flags: <defaults>
</compile_context>

<pallas_src>
import jax
import jax.numpy as jnp
from jax.experimental import pallas as pl
from jax.experimental.pallas import tpu as pltpu

# ---- model dimensions ------------------------------------------------------
D_IN, D_H1, D_H2, D_OUT = 5, 8, 4, 12
LANES = 128          # lane width (last dim) for every on-chip buffer

# ---- packed-parameter slab layout (rows x 128 lanes, f32) ------------------
W1_ROW, B1_ROW = 0, 5          # w1 rows 0..4,  b1 row 5   (8 valid lanes)
W2_ROW, B2_ROW = 6, 14         # w2 rows 6..13, b2 row 14  (4 valid lanes)
W3_ROW, B3_ROW = 15, 19        # w3 rows 15..18, b3 row 19 (12 valid lanes)
SLAB_ROWS = 24                 # padded to a multiple of 8

MAX_BATCH_TILE = 512           # rows per grid step once batch gets large


def _mlp_kernel(x_ref, p_ref, o_ref):
    """x_ref: (TB, 128) activations (lanes 0..4 valid, rest zero)
       p_ref: (24, 128) packed params (zero-padded lanes)
       o_ref: (TB, 128) lane-dense output (lanes 0..11 valid)."""
    x = x_ref[...]
    p = p_ref[...]

    def layer(h, k_dim, w_row, b_row):
        # VPU FMA over the (tiny) contraction dim, statically unrolled.
        # Zero-padded weight/bias lanes keep the unused lanes exactly 0.
        acc = h[:, 0:1] * p[w_row:w_row + 1, :] + p[b_row:b_row + 1, :]
        for k in range(1, k_dim):
            acc = acc + h[:, k:k + 1] * p[w_row + k:w_row + k + 1, :]
        return jnp.maximum(acc, 0.0)

    h1 = layer(x, D_IN, W1_ROW, B1_ROW)    # (TB, 128), lanes 0..7 valid
    h2 = layer(h1, D_H1, W2_ROW, B2_ROW)   # (TB, 128), lanes 0..3 valid
    h3 = layer(h2, D_H2, W3_ROW, B3_ROW)   # (TB, 128), lanes 0..11 valid
    o_ref[...] = h3.astype(o_ref.dtype)


def pack_params(params):
    """Pack w1,b1,w2,b2,w3,b3 into a single lane-padded (24,128) f32 slab."""
    slab = jnp.zeros((SLAB_ROWS, LANES), jnp.float32)
    slab = slab.at[W1_ROW:W1_ROW + D_IN, :D_H1].set(params["w1"])
    slab = slab.at[B1_ROW, :D_H1].set(params["b1"].reshape(-1))
    slab = slab.at[W2_ROW:W2_ROW + D_H1, :D_H2].set(params["w2"])
    slab = slab.at[B2_ROW, :D_H2].set(params["b2"].reshape(-1))
    slab = slab.at[W3_ROW:W3_ROW + D_H2, :D_OUT].set(params["w3"])
    slab = slab.at[B3_ROW, :D_OUT].set(params["b3"].reshape(-1))
    return slab


def simple_model_forward(x, slab):
    """x: (B, 5) f32, slab: packed params from pack_params. Returns (B, 12)."""
    B = x.shape[0]

    # Pad batch to a multiple of 8 (f32 sublane tile); tile it if large.
    b_pad = ((B + 7) // 8) * 8
    if b_pad > MAX_BATCH_TILE:
        tb = MAX_BATCH_TILE
        b_pad = pl.cdiv(b_pad, tb) * tb
    else:
        tb = b_pad
    grid = (b_pad // tb,)

    # Lane-pad the input to 128 (lanes >= 5 are zero -> harmless in the FMA).
    x_pad = jnp.zeros((b_pad, LANES), jnp.float32).at[:B, :D_IN].set(x)

    out = pl.pallas_call(
        _mlp_kernel,
        out_shape=jax.ShapeDtypeStruct((b_pad, LANES), jnp.float32),
        grid=grid,
        in_specs=[
            pl.BlockSpec((tb, LANES), lambda i: (i, 0)),          # x tile
            pl.BlockSpec((SLAB_ROWS, LANES), lambda i: (0, 0)),   # params (replicated)
        ],
        out_specs=pl.BlockSpec((tb, LANES), lambda i: (i, 0)),
        compiler_params=pltpu.CompilerParams(
            dimension_semantics=("parallel",)),
    )(x_pad, slab)

    # Slice away batch / lane padding (lane-dense store happened in-kernel).
    return out[:B, :D_OUT]


def init_params(key):
    """Deterministic init mimicking nn.Linear's U(-1/sqrt(fan_in), ...)."""
    def linear(key, fan_in, fan_out):
        kw, kb = jax.random.split(key)
        bound = 1.0 / jnp.sqrt(fan_in)
        w = jax.random.uniform(kw, (fan_in, fan_out), jnp.float32, -bound, bound)
        b = jax.random.uniform(kb, (1, fan_out), jnp.float32, -bound, bound)
        return w, b

    k1, k2, k3 = jax.random.split(key, 3)
    w1, b1 = linear(k1, D_IN, D_H1)
    w2, b2 = linear(k2, D_H1, D_H2)
    w3, b3 = linear(k3, D_H2, D_OUT)
    return {"w1": w1, "b1": b1, "w2": w2, "b2": b2, "w3": w3, "b3": b3}


def reference_forward(x, p):
    h = jnp.maximum(x @ p["w1"] + p["b1"], 0.0)
    h = jnp.maximum(h @ p["w2"] + p["b2"], 0.0)
    h = jnp.maximum(h @ p["w3"] + p["b3"], 0.0)
    return h


if __name__ == "__main__":
    key = jax.random.PRNGKey(0)
    kx, kp = jax.random.split(key)

    # Matches SimpleModel.get_input(): torch.rand(4, 5)
    x = jax.random.uniform(kx, (4, D_IN), jnp.float32)
    params = init_params(kp)
    slab = pack_params(params)

    out = simple_model_forward(x, slab)
    out = jax.block_until_ready(out)

    ref = reference_forward(x, params)
    assert out.shape == (4, D_OUT), out.shape
    assert jnp.allclose(out, ref, atol=1e-5, rtol=1e-5), "mismatch vs reference"

    print("KERNEL_OK")
</pallas_src>

<mosaic_0001>
module attributes {stable_mosaic.version = 11 : i64} {
  func.func @_mlp_kernel(%arg0: i32, %arg1: memref<8x128xf32, #tpu.memory_space<vmem>>, %arg2: memref<24x128xf32, #tpu.memory_space<vmem>>, %arg3: memref<8x128xf32, #tpu.memory_space<vmem>>) attributes {dimension_semantics = [#tpu.dimension_semantics<parallel>], iteration_bounds = array<i64: 1>, scalar_prefetch = 0 : i64, scratch_operands = 0 : i64, tpu.core_type = #tpu.core_type<tc>, window_params = [{transform_indices = @transform_0, window_bounds = array<i64: 8, 128>}, {pipeline_mode = #tpu.pipeline_mode<synchronous>, transform_indices = @transform_1, window_bounds = array<i64: 24, 128>}, {transform_indices = @transform_2, window_bounds = array<i64: 8, 128>}]} {
    %c0 = arith.constant 0 : index
    %c0_0 = arith.constant 0 : index
    %0 = vector.load %arg1[%c0, %c0_0] : memref<8x128xf32, #tpu.memory_space<vmem>>, vector<8x128xf32>
    %c0_1 = arith.constant 0 : index
    %c0_2 = arith.constant 0 : index
    %1 = vector.load %arg2[%c0_1, %c0_2] : memref<24x128xf32, #tpu.memory_space<vmem>>, vector<24x128xf32>
    %2 = vector.extract_strided_slice %0 {offsets = [0, 0], sizes = [8, 1], strides = [1, 1]} : vector<8x128xf32> to vector<8x1xf32>
    %3 = vector.extract_strided_slice %1 {offsets = [0, 0], sizes = [1, 128], strides = [1, 1]} : vector<24x128xf32> to vector<1x128xf32>
    %4 = vector.broadcast %2 : vector<8x1xf32> to vector<8x128xf32>
    %5 = vector.broadcast %3 : vector<1x128xf32> to vector<8x128xf32>
    %6 = arith.mulf %4, %5 : vector<8x128xf32>
    %7 = vector.extract_strided_slice %1 {offsets = [5, 0], sizes = [1, 128], strides = [1, 1]} : vector<24x128xf32> to vector<1x128xf32>
    %8 = vector.broadcast %7 : vector<1x128xf32> to vector<8x128xf32>
    %9 = arith.addf %6, %8 : vector<8x128xf32>
    %10 = vector.extract_strided_slice %0 {offsets = [0, 1], sizes = [8, 1], strides = [1, 1]} : vector<8x128xf32> to vector<8x1xf32>
    %11 = vector.extract_strided_slice %1 {offsets = [1, 0], sizes = [1, 128], strides = [1, 1]} : vector<24x128xf32> to vector<1x128xf32>
    %12 = vector.broadcast %10 : vector<8x1xf32> to vector<8x128xf32>
    %13 = vector.broadcast %11 : vector<1x128xf32> to vector<8x128xf32>
    %14 = arith.mulf %12, %13 : vector<8x128xf32>
    %15 = arith.addf %9, %14 : vector<8x128xf32>
    %16 = vector.extract_strided_slice %0 {offsets = [0, 2], sizes = [8, 1], strides = [1, 1]} : vector<8x128xf32> to vector<8x1xf32>
    %17 = vector.extract_strided_slice %1 {offsets = [2, 0], sizes = [1, 128], strides = [1, 1]} : vector<24x128xf32> to vector<1x128xf32>
    %18 = vector.broadcast %16 : vector<8x1xf32> to vector<8x128xf32>
    %19 = vector.broadcast %17 : vector<1x128xf32> to vector<8x128xf32>
    %20 = arith.mulf %18, %19 : vector<8x128xf32>
    %21 = arith.addf %15, %20 : vector<8x128xf32>
    %22 = vector.extract_strided_slice %0 {offsets = [0, 3], sizes = [8, 1], strides = [1, 1]} : vector<8x128xf32> to vector<8x1xf32>
    %23 = vector.extract_strided_slice %1 {offsets = [3, 0], sizes = [1, 128], strides = [1, 1]} : vector<24x128xf32> to vector<1x128xf32>
    %24 = vector.broadcast %22 : vector<8x1xf32> to vector<8x128xf32>
    %25 = vector.broadcast %23 : vector<1x128xf32> to vector<8x128xf32>
    %26 = arith.mulf %24, %25 : vector<8x128xf32>
    %27 = arith.addf %21, %26 : vector<8x128xf32>
    %28 = vector.extract_strided_slice %0 {offsets = [0, 4], sizes = [8, 1], strides = [1, 1]} : vector<8x128xf32> to vector<8x1xf32>
    %29 = vector.extract_strided_slice %1 {offsets = [4, 0], sizes = [1, 128], strides = [1, 1]} : vector<24x128xf32> to vector<1x128xf32>
    %30 = vector.broadcast %28 : vector<8x1xf32> to vector<8x128xf32>
    %31 = vector.broadcast %29 : vector<1x128xf32> to vector<8x128xf32>
    %32 = arith.mulf %30, %31 : vector<8x128xf32>
    %33 = arith.addf %27, %32 : vector<8x128xf32>
    %cst = arith.constant 0.000000e+00 : f32
    %34 = vector.broadcast %cst : f32 to vector<8x128xf32>
    %35 = arith.maximumf %33, %34 : vector<8x128xf32>
    %36 = vector.extract_strided_slice %35 {offsets = [0, 0], sizes = [8, 1], strides = [1, 1]} : vector<8x128xf32> to vector<8x1xf32>
    %37 = vector.extract_strided_slice %1 {offsets = [6, 0], sizes = [1, 128], strides = [1, 1]} : vector<24x128xf32> to vector<1x128xf32>
    %38 = vector.broadcast %36 : vector<8x1xf32> to vector<8x128xf32>
    %39 = vector.broadcast %37 : vector<1x128xf32> to vector<8x128xf32>
    %40 = arith.mulf %38, %39 : vector<8x128xf32>
    %41 = vector.extract_strided_slice %1 {offsets = [14, 0], sizes = [1, 128], strides = [1, 1]} : vector<24x128xf32> to vector<1x128xf32>
    %42 = vector.broadcast %41 : vector<1x128xf32> to vector<8x128xf32>
    %43 = arith.addf %40, %42 : vector<8x128xf32>
    %44 = vector.extract_strided_slice %35 {offsets = [0, 1], sizes = [8, 1], strides = [1, 1]} : vector<8x128xf32> to vector<8x1xf32>
    %45 = vector.extract_strided_slice %1 {offsets = [7, 0], sizes = [1, 128], strides = [1, 1]} : vector<24x128xf32> to vector<1x128xf32>
    %46 = vector.broadcast %44 : vector<8x1xf32> to vector<8x128xf32>
    %47 = vector.broadcast %45 : vector<1x128xf32> to vector<8x128xf32>
    %48 = arith.mulf %46, %47 : vector<8x128xf32>
    %49 = arith.addf %43, %48 : vector<8x128xf32>
    %50 = vector.extract_strided_slice %35 {offsets = [0, 2], sizes = [8, 1], strides = [1, 1]} : vector<8x128xf32> to vector<8x1xf32>
    %51 = vector.extract_strided_slice %1 {offsets = [8, 0], sizes = [1, 128], strides = [1, 1]} : vector<24x128xf32> to vector<1x128xf32>
    %52 = vector.broadcast %50 : vector<8x1xf32> to vector<8x128xf32>
    %53 = vector.broadcast %51 : vector<1x128xf32> to vector<8x128xf32>
    %54 = arith.mulf %52, %53 : vector<8x128xf32>
    %55 = arith.addf %49, %54 : vector<8x128xf32>
    %56 = vector.extract_strided_slice %35 {offsets = [0, 3], sizes = [8, 1], strides = [1, 1]} : vector<8x128xf32> to vector<8x1xf32>
    %57 = vector.extract_strided_slice %1 {offsets = [9, 0], sizes = [1, 128], strides = [1, 1]} : vector<24x128xf32> to vector<1x128xf32>
    %58 = vector.broadcast %56 : vector<8x1xf32> to vector<8x128xf32>
    %59 = vector.broadcast %57 : vector<1x128xf32> to vector<8x128xf32>
    %60 = arith.mulf %58, %59 : vector<8x128xf32>
    %61 = arith.addf %55, %60 : vector<8x128xf32>
    %62 = vector.extract_strided_slice %35 {offsets = [0, 4], sizes = [8, 1], strides = [1, 1]} : vector<8x128xf32> to vector<8x1xf32>
    %63 = vector.extract_strided_slice %1 {offsets = [10, 0], sizes = [1, 128], strides = [1, 1]} : vector<24x128xf32> to vector<1x128xf32>
    %64 = vector.broadcast %62 : vector<8x1xf32> to vector<8x128xf32>
    %65 = vector.broadcast %63 : vector<1x128xf32> to vector<8x128xf32>
    %66 = arith.mulf %64, %65 : vector<8x128xf32>
    %67 = arith.addf %61, %66 : vector<8x128xf32>
    %68 = vector.extract_strided_slice %35 {offsets = [0, 5], sizes = [8, 1], strides = [1, 1]} : vector<8x128xf32> to vector<8x1xf32>
    %69 = vector.extract_strided_slice %1 {offsets = [11, 0], sizes = [1, 128], strides = [1, 1]} : vector<24x128xf32> to vector<1x128xf32>
    %70 = vector.broadcast %68 : vector<8x1xf32> to vector<8x128xf32>
    %71 = vector.broadcast %69 : vector<1x128xf32> to vector<8x128xf32>
    %72 = arith.mulf %70, %71 : vector<8x128xf32>
    %73 = arith.addf %67, %72 : vector<8x128xf32>
    %74 = vector.extract_strided_slice %35 {offsets = [0, 6], sizes = [8, 1], strides = [1, 1]} : vector<8x128xf32> to vector<8x1xf32>
    %75 = vector.extract_strided_slice %1 {offsets = [12, 0], sizes = [1, 128], strides = [1, 1]} : vector<24x128xf32> to vector<1x128xf32>
    %76 = vector.broadcast %74 : vector<8x1xf32> to vector<8x128xf32>
    %77 = vector.broadcast %75 : vector<1x128xf32> to vector<8x128xf32>
    %78 = arith.mulf %76, %77 : vector<8x128xf32>
    %79 = arith.addf %73, %78 : vector<8x128xf32>
    %80 = vector.extract_strided_slice %35 {offsets = [0, 7], sizes = [8, 1], strides = [1, 1]} : vector<8x128xf32> to vector<8x1xf32>
    %81 = vector.extract_strided_slice %1 {offsets = [13, 0], sizes = [1, 128], strides = [1, 1]} : vector<24x128xf32> to vector<1x128xf32>
    %82 = vector.broadcast %80 : vector<8x1xf32> to vector<8x128xf32>
    %83 = vector.broadcast %81 : vector<1x128xf32> to vector<8x128xf32>
    %84 = arith.mulf %82, %83 : vector<8x128xf32>
    %85 = arith.addf %79, %84 : vector<8x128xf32>
    %cst_3 = arith.constant 0.000000e+00 : f32
    %86 = vector.broadcast %cst_3 : f32 to vector<8x128xf32>
    %87 = arith.maximumf %85, %86 : vector<8x128xf32>
    %88 = vector.extract_strided_slice %87 {offsets = [0, 0], sizes = [8, 1], strides = [1, 1]} : vector<8x128xf32> to vector<8x1xf32>
    %89 = vector.extract_strided_slice %1 {offsets = [15, 0], sizes = [1, 128], strides = [1, 1]} : vector<24x128xf32> to vector<1x128xf32>
    %90 = vector.broadcast %88 : vector<8x1xf32> to vector<8x128xf32>
    %91 = vector.broadcast %89 : vector<1x128xf32> to vector<8x128xf32>
    %92 = arith.mulf %90, %91 : vector<8x128xf32>
    %93 = vector.extract_strided_slice %1 {offsets = [19, 0], sizes = [1, 128], strides = [1, 1]} : vector<24x128xf32> to vector<1x128xf32>
    %94 = vector.broadcast %93 : vector<1x128xf32> to vector<8x128xf32>
    %95 = arith.addf %92, %94 : vector<8x128xf32>
    %96 = vector.extract_strided_slice %87 {offsets = [0, 1], sizes = [8, 1], strides = [1, 1]} : vector<8x128xf32> to vector<8x1xf32>
    %97 = vector.extract_strided_slice %1 {offsets = [16, 0], sizes = [1, 128], strides = [1, 1]} : vector<24x128xf32> to vector<1x128xf32>
    %98 = vector.broadcast %96 : vector<8x1xf32> to vector<8x128xf32>
    %99 = vector.broadcast %97 : vector<1x128xf32> to vector<8x128xf32>
    %100 = arith.mulf %98, %99 : vector<8x128xf32>
    %101 = arith.addf %95, %100 : vector<8x128xf32>
    %102 = vector.extract_strided_slice %87 {offsets = [0, 2], sizes = [8, 1], strides = [1, 1]} : vector<8x128xf32> to vector<8x1xf32>
    %103 = vector.extract_strided_slice %1 {offsets = [17, 0], sizes = [1, 128], strides = [1, 1]} : vector<24x128xf32> to vector<1x128xf32>
    %104 = vector.broadcast %102 : vector<8x1xf32> to vector<8x128xf32>
    %105 = vector.broadcast %103 : vector<1x128xf32> to vector<8x128xf32>
    %106 = arith.mulf %104, %105 : vector<8x128xf32>
    %107 = arith.addf %101, %106 : vector<8x128xf32>
    %108 = vector.extract_strided_slice %87 {offsets = [0, 3], sizes = [8, 1], strides = [1, 1]} : vector<8x128xf32> to vector<8x1xf32>
    %109 = vector.extract_strided_slice %1 {offsets = [18, 0], sizes = [1, 128], strides = [1, 1]} : vector<24x128xf32> to vector<1x128xf32>
    %110 = vector.broadcast %108 : vector<8x1xf32> to vector<8x128xf32>
    %111 = vector.broadcast %109 : vector<1x128xf32> to vector<8x128xf32>
    %112 = arith.mulf %110, %111 : vector<8x128xf32>
    %113 = arith.addf %107, %112 : vector<8x128xf32>
    %cst_4 = arith.constant 0.000000e+00 : f32
    %114 = vector.broadcast %cst_4 : f32 to vector<8x128xf32>
    %115 = arith.maximumf %113, %114 : vector<8x128xf32>
    %c0_5 = arith.constant 0 : index
    %c0_6 = arith.constant 0 : index
    %116 = vector.load %arg3[%c0_5, %c0_6] : memref<8x128xf32, #tpu.memory_space<vmem>>, vector<8x128xf32>
    tpu.vector_store %arg3[%c0_5, %c0_6], %115 {strides = array<i32>} : memref<8x128xf32, #tpu.memory_space<vmem>>, vector<8x128xf32>,
    return
  }
  func.func @transform_0(%arg0: i32) -> (i32, i32) {
    %c0_i32 = arith.constant 0 : i32
    %c0_i32_0 = arith.constant 0 : i32
    return %arg0, %c0_i32 : i32, i32
  }
  func.func @transform_1(%arg0: i32) -> (i32, i32) {
    %c0_i32 = arith.constant 0 : i32
    %c0_i32_0 = arith.constant 0 : i32
    %c0_i32_1 = arith.constant 0 : i32
    return %c0_i32, %c0_i32_0 : i32, i32
  }
  func.func @transform_2(%arg0: i32) -> (i32, i32) {
    %c0_i32 = arith.constant 0 : i32
    %c0_i32_0 = arith.constant 0 : i32
    return %arg0, %c0_i32 : i32, i32
  }
}

</mosaic_0001>

<llo_original>
// kernel: tpu_custom_call.1
$region0: #{tpu_custom_call.1}
  #allocation0 [shape = 'u32[]', space=smem, size = 0x4, offset = 0x4, fixed_abs, tag = 'smem constant byte address 0x4 - core index']
  #allocation1 [shape = 'u32[144,128]{1,0:T(1,128)}', space=vmem, size = 0x12000, scoped, tag = 'internal scratch']
  %s0 = inlined_call_operand.hbm [shape: f32[8,128], index: 0, kind: input, shape index: {}]
  %s1 = inlined_call_operand.hbm [shape: f32[24,128], index: 1, kind: input, shape index: {}]
  %s2 = inlined_call_operand.hbm [shape: f32[8,128], index: 2, kind: output, shape index: {}]
  %s3 = sld [smem:[#allocation0]]
  $region26: #{tpu_custom_call.1} parent=0
    _
  %s5 = ssub.s32 1, %s3
  %s6 = scalar_select 0, %s5, %s3
  $region1: #{tpu_custom_call.1} parent=0
    #allocation2 [shape = 'u8[4096]{0}', space=vmem, size = 0x1000, scoped, tag = 'input window, operand 0, single buffered']
    #allocation3 [shape = 's32[1]{0}', space=sflag, size = 0x4, scoped, tag = 'scoped memory for tpu_custom_call.1']
    #allocation4 [shape = 's32[1]{0}', space=sflag, size = 0x4, scoped, tag = 'scoped memory for tpu_custom_call.1']
    #allocation5 [shape = 'u8[12288]{0}', space=vmem, size = 0x3000, scoped, tag = 'input window, operand 1, single buffered']
    #allocation6 [shape = 's32[1]{0}', space=sflag, size = 0x4, scoped, tag = 'scoped memory for tpu_custom_call.1']
    #allocation7 [shape = 'u8[4096]{0}', space=vmem, size = 0x1000, scoped, tag = 'output window, operand 0, single buffered']
    %7 = vsyncpa [#allocation3], 0
    %8 = vsyncpa [#allocation6], 0
    %9 = vsyncpa [#allocation4], 0
    // Predicated region
    $region2: #{tpu_custom_call.1} parent=1 // pred_check
      _
    $region3: #{tpu_custom_call.1} parent=1 // pred_check_branch
      %11 = sbr.rel (0) target = $region5
    $region4: #{tpu_custom_call.1} parent=1 // pred_region
      %s13 = ssub.s32 128, 128
      %14 = vsyncadd [#allocation3], %s13
      %s16 = sshll.u32 [#allocation2], 4
      %s17 = int_to_ptr.vmem [resolvable:$true] %s16
      %19 = dma.hbm_to_vmem [thread:$0]  %s0, 128, %s17, [#allocation3]
    $region5: #{tpu_custom_call.1} parent=1 // pred_fallthru
      _
    // Predicated region
    $region6: #{tpu_custom_call.1} parent=1 // pred_check
      _
    $region7: #{tpu_custom_call.1} parent=1 // pred_check_branch
      %21 = sbr.rel (0) target = $region9
    $region8: #{tpu_custom_call.1} parent=1 // pred_region
      %s23 = ssub.s32 384, 384
      %24 = vsyncadd [#allocation6], %s23
      %s25 = sshll.u32 [#allocation5], 4
      %s26 = int_to_ptr.vmem [resolvable:$true] %s25
      %31 = dma.hbm_to_vmem [thread:$0]  %s1, 384, %s26, [#allocation6], 128, 128, 8
    $region9: #{tpu_custom_call.1} parent=1 // pred_fallthru
      _
    // Predicated region
    $region10: #{tpu_custom_call.1} parent=1 // pred_check
      _
    $region11: #{tpu_custom_call.1} parent=1 // pred_check_branch
      %33 = sbr.rel (0) target = $region13
    $region12: #{tpu_custom_call.1} parent=1 // pred_region
      %34 = dma.done [#allocation3], 128
    $region13: #{tpu_custom_call.1} parent=1 // pred_fallthru
      _
    // Predicated region
    $region14: #{tpu_custom_call.1} parent=1 // pred_check
      _
    $region15: #{tpu_custom_call.1} parent=1 // pred_check_branch
      %36 = sbr.rel (0) target = $region17
    $region16: #{tpu_custom_call.1} parent=1 // pred_region
      %37 = dma.done [#allocation6], 384
    $region17: #{tpu_custom_call.1} parent=1 // pred_fallthru
      _
    %v38 = vld [vmem:[#allocation2] sm:$0xff]
    %v39 = vld [vmem:[#allocation5] sm:$0xff]
    %v40 = vld [vmem:[#allocation5 + $0x8] sm:$0xff]
    %v41 = vld [vmem:[#allocation5 + $0x10] sm:$0xff]
    %43 = vset.pattern.permute.xlu0 0
    %44 = vperm.xlu0 %43, %v38
    %v45 = vpop.permute.xlu0 %44
    %v47 = vlaneseq
    %v48 = vshrl.u32 %v47, 7
    %v49 = vsub.s32 0, %v48
    %v50 = vrot.slane %v39, %v49
    %v51 = vmul.f32 %v45, %v50
    %v52 = vlaneseq
    %v53 = vshrl.u32 %v52, 7
    %v54 = vsub.s32 5, %v53
    %v55 = vrot.slane %v39, %v54
    %v56 = vadd.f32 %v51, %v55
    %57 = vset.pattern.permute.xlu0 1
    %58 = vperm.xlu0 %57, %v38
    %v59 = vpop.permute.xlu0 %58
    %v61 = vlaneseq
    %v62 = vshrl.u32 %v61, 7
    %v63 = vsub.s32 1, %v62
    %v64 = vrot.slane %v39, %v63
    %v65 = vmul.f32 %v59, %v64
    %v66 = vadd.f32 %v56, %v65
    %67 = vset.pattern.permute.xlu0 2
    %68 = vperm.xlu0 %67, %v38
    %v69 = vpop.permute.xlu0 %68
    %v71 = vlaneseq
    %v72 = vshrl.u32 %v71, 7
    %v73 = vsub.s32 2, %v72
    %v74 = vrot.slane %v39, %v73
    %v75 = vmul.f32 %v69, %v74
    %v76 = vadd.f32 %v66, %v75
    %77 = vset.pattern.permute.xlu0 3
    %78 = vperm.xlu0 %77, %v38
    %v79 = vpop.permute.xlu0 %78
    %v81 = vlaneseq
    %v82 = vshrl.u32 %v81, 7
    %v83 = vsub.s32 3, %v82
    %v84 = vrot.slane %v39, %v83
    %v85 = vmul.f32 %v79, %v84
    %v86 = vadd.f32 %v76, %v85
    %87 = vset.pattern.permute.xlu0 4
    %88 = vperm.xlu0 %87, %v38
    %v89 = vpop.permute.xlu0 %88
    %v91 = vlaneseq
    %v92 = vshrl.u32 %v91, 7
    %v93 = vsub.s32 4, %v92
    %v94 = vrot.slane %v39, %v93
    %v95 = vmul.f32 %v89, %v94
    %v96 = vadd.f32 %v86, %v95
    %v97 = vmax.f32 %v96, 0.0
    %99 = vset.pattern.permute.xlu0 0
    %100 = vperm.xlu0 %99, %v97
    %v101 = vpop.permute.xlu0 %100
    %v103 = vlaneseq
    %v104 = vshrl.u32 %v103, 7
    %v105 = vsub.s32 6, %v104
    %v106 = vrot.slane %v39, %v105
    %v107 = vmul.f32 %v101, %v106
    %v108 = vlaneseq
    %v109 = vshrl.u32 %v108, 7
    %v110 = vsub.s32 6, %v109
    %v111 = vrot.slane %v40, %v110
    %v112 = vadd.f32 %v107, %v111
    %113 = vset.pattern.permute.xlu0 1
    %114 = vperm.xlu0 %113, %v97
    %v115 = vpop.permute.xlu0 %114
    %v117 = vlaneseq
    %v118 = vshrl.u32 %v117, 7
    %v119 = vsub.s32 7, %v118
    %v120 = vrot.slane %v39, %v119
    %v121 = vmul.f32 %v115, %v120
    %v122 = vadd.f32 %v112, %v121
    %123 = vset.pattern.permute.xlu0 2
    %124 = vperm.xlu0 %123, %v97
    %v125 = vpop.permute.xlu0 %124
    %v127 = vlaneseq
    %v128 = vshrl.u32 %v127, 7
    %v129 = vsub.s32 0, %v128
    %v130 = vrot.slane %v40, %v129
    %v131 = vmul.f32 %v125, %v130
    %v132 = vadd.f32 %v122, %v131
    %133 = vset.pattern.permute.xlu0 3
    %134 = vperm.xlu0 %133, %v97
    %v135 = vpop.permute.xlu0 %134
    %v137 = vlaneseq
    %v138 = vshrl.u32 %v137, 7
    %v139 = vsub.s32 1, %v138
    %v140 = vrot.slane %v40, %v139
    %v141 = vmul.f32 %v135, %v140
    %v142 = vadd.f32 %v132, %v141
    %143 = vset.pattern.permute.xlu0 4
    %144 = vperm.xlu0 %143, %v97
    %v145 = vpop.permute.xlu0 %144
    %v147 = vlaneseq
    %v148 = vshrl.u32 %v147, 7
    %v149 = vsub.s32 2, %v148
    %v150 = vrot.slane %v40, %v149
    %v151 = vmul.f32 %v145, %v150
    %v152 = vadd.f32 %v142, %v151
    %153 = vset.pattern.permute.xlu0 5
    %154 = vperm.xlu0 %153, %v97
    %v155 = vpop.permute.xlu0 %154
    %v157 = vlaneseq
    %v158 = vshrl.u32 %v157, 7
    %v159 = vsub.s32 3, %v158
    %v160 = vrot.slane %v40, %v159
    %v161 = vmul.f32 %v155, %v160
    %v162 = vadd.f32 %v152, %v161
    %163 = vset.pattern.permute.xlu0 6
    %164 = vperm.xlu0 %163, %v97
    %v165 = vpop.permute.xlu0 %164
    %v167 = vlaneseq
    %v168 = vshrl.u32 %v167, 7
    %v169 = vsub.s32 4, %v168
    %v170 = vrot.slane %v40, %v169
    %v171 = vmul.f32 %v165, %v170
    %v172 = vadd.f32 %v162, %v171
    %173 = vset.pattern.permute.xlu0 7
    %174 = vperm.xlu0 %173, %v97
    %v175 = vpop.permute.xlu0 %174
    %v177 = vlaneseq
    %v178 = vshrl.u32 %v177, 7
    %v179 = vsub.s32 5, %v178
    %v180 = vrot.slane %v40, %v179
    %v181 = vmul.f32 %v175, %v180
    %v182 = vadd.f32 %v172, %v181
    %v183 = vmax.f32 %v182, 0.0
    %185 = vset.pattern.permute.xlu0 0
    %186 = vperm.xlu0 %185, %v183
    %v187 = vpop.permute.xlu0 %186
    %v189 = vlaneseq
    %v190 = vshrl.u32 %v189, 7
    %v191 = vsub.s32 7, %v190
    %v192 = vrot.slane %v40, %v191
    %v193 = vmul.f32 %v187, %v192
    %v194 = vlaneseq
    %v195 = vshrl.u32 %v194, 7
    %v196 = vsub.s32 3, %v195
    %v197 = vrot.slane %v41, %v196
    %v198 = vadd.f32 %v193, %v197
    %199 = vset.pattern.permute.xlu0 1
    %200 = vperm.xlu0 %199, %v183
    %v201 = vpop.permute.xlu0 %200
    %v203 = vlaneseq
    %v204 = vshrl.u32 %v203, 7
    %v205 = vsub.s32 0, %v204
    %v206 = vrot.slane %v41, %v205
    %v207 = vmul.f32 %v201, %v206
    %v208 = vadd.f32 %v198, %v207
    %209 = vset.pattern.permute.xlu0 2
    %210 = vperm.xlu0 %209, %v183
    %v211 = vpop.permute.xlu0 %210
    %v213 = vlaneseq
    %v214 = vshrl.u32 %v213, 7
    %v215 = vsub.s32 1, %v214
    %v216 = vrot.slane %v41, %v215
    %v217 = vmul.f32 %v211, %v216
    %v218 = vadd.f32 %v208, %v217
    %219 = vset.pattern.permute.xlu0 3
    %220 = vperm.xlu0 %219, %v183
    %v221 = vpop.permute.xlu0 %220
    %v223 = vlaneseq
    %v224 = vshrl.u32 %v223, 7
    %v225 = vsub.s32 2, %v224
    %v226 = vrot.slane %v41, %v225
    %v227 = vmul.f32 %v221, %v226
    %v228 = vadd.f32 %v218, %v227
    %v229 = vmax.f32 %v228, 0.0
    %230 = vst [vmem:[#allocation7] sm:$0xff] %v229
    // Predicated region
    $region18: #{tpu_custom_call.1} parent=1 // pred_check
      _
    $region19: #{tpu_custom_call.1} parent=1 // pred_check_branch
      %232 = sbr.rel (0) target = $region21
    $region20: #{tpu_custom_call.1} parent=1 // pred_region
      %s234 = ssub.s32 128, 128
      %235 = vsyncadd [#allocation4], %s234
      %s237 = sshll.u32 [#allocation7], 4
      %s238 = int_to_ptr.vmem [resolvable:$true] %s237
      %240 = dma.vmem_to_hbm [thread:$0]  %s238, 128, %s2, [#allocation4]
    $region21: #{tpu_custom_call.1} parent=1 // pred_fallthru
      _
    // Predicated region
    $region22: #{tpu_custom_call.1} parent=1 // pred_check
      _
    $region23: #{tpu_custom_call.1} parent=1 // pred_check_branch
      %242 = sbr.rel (0) target = $region25
    $region24: #{tpu_custom_call.1} parent=1 // pred_region
      %243 = dma.done [#allocation4], 128
    $region25: #{tpu_custom_call.1} parent=1 // pred_fallthru
      _
    %244 = vsyncpa [#allocation3], 1
    %245 = vsyncpa [#allocation6], 1
    %246 = vsyncpa [#allocation4], 1

</llo_original>
